<compile_context>
chip_gen: v6e
topology: v6e:2x2x1
jax: 0.10.0
libtpu: 0.0.40
codegen_flags: <defaults>
</compile_context>

<pallas_src>
import functools

import jax
import jax.numpy as jnp
from jax.experimental import pallas as pl
from jax.experimental.pallas import tpu as pltpu


def _ce_rowloss_kernel(logits_ref, targets_ref, loss_ref, *, n_total, tile_n):
    """Per-row NLL for one (TILE_N, C) block of logits.

    logits_ref : (TILE_N, C)  native-dtype VMEM tile (cast to f32 in-register)
    targets_ref: (TILE_N, 1)  int32 VMEM tile of class indices
    loss_ref   : (TILE_N, 1)  f32 VMEM tile of per-example losses
                 (0.0 for padded rows and ignored / out-of-range targets)
    """
    pid = pl.program_id(0)
    x = logits_ref[...].astype(jnp.float32)            # (TILE_N, C) f32
    t = targets_ref[...]                                # (TILE_N, 1) int32
    c = x.shape[-1]

    # Valid-row mask: inside the true batch and target in [0, C).
    # (Also drops PyTorch's ignore_index = -100 rows.)
    row = pid * tile_n + jax.lax.broadcasted_iota(jnp.int32, (tile_n, 1), 0)
    valid = (row < n_total) & (t >= 0) & (t < c)        # (TILE_N, 1) bool

    # Numerically-stable log-sum-exp along the lane (class) axis.
    m = jnp.max(x, axis=-1, keepdims=True)                                # (TILE_N, 1)
    lse = m + jnp.log(jnp.sum(jnp.exp(x - m), axis=-1, keepdims=True))    # (TILE_N, 1)

    # Gather the target-class logit with a lane-iota one-hot mask.
    col = jax.lax.broadcasted_iota(jnp.int32, x.shape, 1)                 # (TILE_N, C)
    tgt_logit = jnp.sum(jnp.where(col == t, x, 0.0), axis=-1, keepdims=True)

    per_example = lse - tgt_logit                       # -log softmax[target]
    loss_ref[...] = jnp.where(valid, per_example, 0.0).astype(jnp.float32)


def inner_loss(inner_product, patch_targets):
    """F.cross_entropy(inner_product, patch_targets) with mean reduction.

    inner_product: (N, C) logits in any float dtype (kept native in HBM)
    patch_targets: (N,)   int class indices
    """
    n, c = inner_product.shape
    targets_2d = patch_targets.astype(jnp.int32).reshape(n, 1)
    itemsize = jnp.dtype(inner_product.dtype).itemsize

    # Tile over N so Pallas can pipeline (double-buffer) DMA against compute.
    # Keep one logits buffer around ~2 MiB -> well under scoped VMEM on all
    # of v5e / v6e / v7x even double-buffered.
    target_block_bytes = 2 * 1024 * 1024
    tile_n = max(8, min(1024, (target_block_bytes // max(c * itemsize, 1)) // 8 * 8))
    if tile_n >= n:
        tile_n = n  # single full-array block is always a legal block shape
    num_tiles = pl.cdiv(n, tile_n)

    # TODO(synk): if C is vocab-scale (a single (tile_n, C) block no longer fits
    # VMEM), add a second "arbitrary" grid axis over C with an online logsumexp.

    vmem_bytes_needed = 2 * (tile_n * c * itemsize      # logits, double-buffered
                             + tile_n * 128 * 4         # targets block (lane-padded)
                             + tile_n * 128 * 4)        # row-loss output block
    vmem_limit = int(min(64 * 1024 * 1024,
                         max(4 * 1024 * 1024, 2 * vmem_bytes_needed)))

    cost = pl.CostEstimate(
        flops=6 * n * c,
        transcendentals=n * c,                          # one exp per element
        bytes_accessed=n * c * itemsize + 2 * n * 4,
    )

    kernel = functools.partial(_ce_rowloss_kernel, n_total=n, tile_n=tile_n)

    per_row = pl.pallas_call(
        kernel,
        out_shape=jax.ShapeDtypeStruct((n, 1), jnp.float32),
        grid_spec=pltpu.PrefetchScalarGridSpec(
            num_scalar_prefetch=0,
            grid=(num_tiles,),
            in_specs=[
                pl.BlockSpec((tile_n, c), lambda i: (i, 0)),
                pl.BlockSpec((tile_n, 1), lambda i: (i, 0)),
            ],
            out_specs=pl.BlockSpec((tile_n, 1), lambda i: (i, 0)),
        ),
        compiler_params=pltpu.CompilerParams(
            dimension_semantics=("parallel",),  # rows independent -> both TCs on v7x
            vmem_limit_bytes=vmem_limit,
        ),
        cost_estimate=cost,
    )(inner_product, targets_2d)

    # reduction='mean': divide by the number of contributing (non-ignored) rows
    # (== N for ordinary in-range targets). Sum is accumulated in f32.
    valid = (patch_targets >= 0) & (patch_targets < c)
    denom = jnp.sum(valid.astype(jnp.float32))
    return jnp.sum(per_row) / denom


def _reference_cross_entropy(logits, targets):
    logits = logits.astype(jnp.float32)
    logp = jax.nn.log_softmax(logits, axis=-1)
    nll = -jnp.take_along_axis(logp, targets[:, None].astype(jnp.int32), axis=-1)
    return jnp.mean(nll)


if __name__ == "__main__":
    key = jax.random.PRNGKey(0)
    k1, k2 = jax.random.split(key)

    N, C = 8, 32  # 8 patches, 32 classes of inner products
    inner_product = jax.random.normal(k1, (N, C), dtype=jnp.float32)
    patch_targets = jax.random.randint(k2, (N,), 0, C, dtype=jnp.int32)

    # f32 path
    loss = inner_loss(inner_product, patch_targets)
    loss = jax.block_until_ready(loss)
    ref = _reference_cross_entropy(inner_product, patch_targets)
    assert jnp.allclose(loss, ref, atol=1e-5, rtol=1e-5), (loss, ref)

    # native bf16 path (no wrapper-side cast; kernel casts after the VMEM load)
    ip_bf16 = inner_product.astype(jnp.bfloat16)
    loss_bf16 = jax.block_until_ready(inner_loss(ip_bf16, patch_targets))
    ref_bf16 = _reference_cross_entropy(ip_bf16.astype(jnp.float32), patch_targets)
    assert jnp.allclose(loss_bf16, ref_bf16, atol=1e-2, rtol=1e-2), (loss_bf16, ref_bf16)

    print("KERNEL_OK")
</pallas_src>

<mosaic_0001>
module attributes {stable_mosaic.version = 11 : i64} {
  func.func @_ce_rowloss_kernel(%arg0: i32, %arg1: memref<8x32xf32, #tpu.memory_space<vmem>>, %arg2: memref<8x1xi32, #tpu.memory_space<vmem>>, %arg3: memref<8x1xf32, #tpu.memory_space<vmem>>) attributes {dimension_semantics = [#tpu.dimension_semantics<parallel>], iteration_bounds = array<i64: 1>, scalar_prefetch = 0 : i64, scratch_operands = 0 : i64, tpu.core_type = #tpu.core_type<tc>, window_params = [{transform_indices = @transform_0, window_bounds = array<i64: 8, 32>}, {transform_indices = @transform_1, window_bounds = array<i64: 8, 1>}, {transform_indices = @transform_2, window_bounds = array<i64: 8, 1>}]} {
    %c0 = arith.constant 0 : index
    %c0_0 = arith.constant 0 : index
    %0 = vector.load %arg1[%c0, %c0_0] : memref<8x32xf32, #tpu.memory_space<vmem>>, vector<8x32xf32>
    %c0_1 = arith.constant 0 : index
    %c0_2 = arith.constant 0 : index
    %1 = vector.load %arg2[%c0_1, %c0_2] : memref<8x1xi32, #tpu.memory_space<vmem>>, vector<8x1xi32>
    %c8_i32 = arith.constant 8 : i32
    %2 = arith.muli %arg0, %c8_i32 : i32
    %3 = tpu.iota {dimensions = array<i32: 0>} : vector<8x1xi32>
    %4 = vector.broadcast %2 : i32 to vector<8x1xi32>
    %5 = arith.addi %4, %3 : vector<8x1xi32>
    %c8_i32_3 = arith.constant 8 : i32
    %6 = vector.broadcast %c8_i32_3 : i32 to vector<8x1xi32>
    %7 = arith.cmpi slt, %5, %6 : vector<8x1xi32>
    %c0_i32 = arith.constant 0 : i32
    %8 = vector.broadcast %c0_i32 : i32 to vector<8x1xi32>
    %9 = arith.cmpi sge, %1, %8 : vector<8x1xi32>
    %10 = arith.andi %7, %9 : vector<8x1xi1>
    %c32_i32 = arith.constant 32 : i32
    %11 = vector.broadcast %c32_i32 : i32 to vector<8x1xi32>
    %12 = arith.cmpi slt, %1, %11 : vector<8x1xi32>
    %13 = arith.andi %10, %12 : vector<8x1xi1>
    %cst = arith.constant dense<0xFF800000> : vector<8xf32>
    %14 = vector.multi_reduction <maximumf>, %0, %cst [1] : vector<8x32xf32> to vector<8xf32>
    %15 = vector.shape_cast %14 : vector<8xf32> to vector<8x1xf32>
    %16 = vector.broadcast %15 : vector<8x1xf32> to vector<8x32xf32>
    %17 = arith.subf %0, %16 : vector<8x32xf32>
    %18 = math.exp %17 : vector<8x32xf32>
    %cst_4 = arith.constant dense<0.000000e+00> : vector<8xf32>
    %19 = vector.multi_reduction <add>, %18, %cst_4 [1] : vector<8x32xf32> to vector<8xf32>
    %20 = vector.shape_cast %19 : vector<8xf32> to vector<8x1xf32>
    %21 = math.log %20 : vector<8x1xf32>
    %22 = arith.addf %15, %21 : vector<8x1xf32>
    %23 = tpu.iota {dimensions = array<i32: 1>} : vector<8x32xi32>
    %24 = vector.broadcast %1 : vector<8x1xi32> to vector<8x32xi32>
    %25 = arith.cmpi eq, %23, %24 : vector<8x32xi32>
    %cst_5 = arith.constant 0.000000e+00 : f32
    %26 = vector.broadcast %cst_5 : f32 to vector<8x32xf32>
    %27 = arith.select %25, %0, %26 : vector<8x32xi1>, vector<8x32xf32>
    %cst_6 = arith.constant dense<0.000000e+00> : vector<8xf32>
    %28 = vector.multi_reduction <add>, %27, %cst_6 [1] : vector<8x32xf32> to vector<8xf32>
    %29 = vector.shape_cast %28 : vector<8xf32> to vector<8x1xf32>
    %30 = arith.subf %22, %29 : vector<8x1xf32>
    %cst_7 = arith.constant 0.000000e+00 : f32
    %31 = vector.broadcast %cst_7 : f32 to vector<8x1xf32>
    %32 = arith.select %13, %30, %31 : vector<8x1xi1>, vector<8x1xf32>
    %c0_8 = arith.constant 0 : index
    %c0_9 = arith.constant 0 : index
    %33 = vector.load %arg3[%c0_8, %c0_9] : memref<8x1xf32, #tpu.memory_space<vmem>>, vector<8x1xf32>
    tpu.vector_store %arg3[%c0_8, %c0_9], %32 {strides = array<i32>} : memref<8x1xf32, #tpu.memory_space<vmem>>, vector<8x1xf32>,
    return
  }
  func.func @transform_0(%arg0: i32) -> (i32, i32) {
    %c0_i32 = arith.constant 0 : i32
    %c0_i32_0 = arith.constant 0 : i32
    return %arg0, %c0_i32 : i32, i32
  }
  func.func @transform_1(%arg0: i32) -> (i32, i32) {
    %c0_i32 = arith.constant 0 : i32
    %c0_i32_0 = arith.constant 0 : i32
    return %arg0, %c0_i32 : i32, i32
  }
  func.func @transform_2(%arg0: i32) -> (i32, i32) {
    %c0_i32 = arith.constant 0 : i32
    %c0_i32_0 = arith.constant 0 : i32
    return %arg0, %c0_i32 : i32, i32
  }
}

</mosaic_0001>

<llo_original>
// kernel: tpu_custom_call.1
$region0: #{tpu_custom_call.1}
  #allocation0 [shape = 'u32[]', space=smem, size = 0x4, offset = 0x4, fixed_abs, tag = 'smem constant byte address 0x4 - core index']
  #allocation1 [shape = 'u32[144,128]{1,0:T(1,128)}', space=vmem, size = 0x12000, scoped, tag = 'internal scratch']
  %s0 = inlined_call_operand.vmem [shape: f32[8,32], index: 0, kind: input, shape index: {}]
  %s1 = inlined_call_operand.vmem [shape: s32[8,1], index: 1, kind: input, shape index: {}]
  %s2 = inlined_call_operand.vmem [shape: f32[8,1], index: 2, kind: output, shape index: {}]
  %s3 = sld [smem:[#allocation0]]
  $region18: #{tpu_custom_call.1} parent=0
    _
  %s5 = ssub.s32 1, %s3
  %s6 = scalar_select 0, %s5, %s3
  // Predicated region
  $region2: #{tpu_custom_call.1} parent=0 // pred_check
    _
  $region3: #{tpu_custom_call.1} parent=0 // pred_check_branch
    %8 = sbr.rel (0) target = $region5
  $region4: #{tpu_custom_call.1} parent=0 // pred_region
    _
  $region5: #{tpu_custom_call.1} parent=0 // pred_fallthru
    _
  // Predicated region
  $region6: #{tpu_custom_call.1} parent=0 // pred_check
    _
  $region7: #{tpu_custom_call.1} parent=0 // pred_check_branch
    %10 = sbr.rel (0) target = $region9
  $region8: #{tpu_custom_call.1} parent=0 // pred_region
    _
  $region9: #{tpu_custom_call.1} parent=0 // pred_fallthru
    _
  %v11 = vld [vmem:[%s0] sm:$0xff]
  %v12 = vld [vmem:[%s1] sm:$0xff]
  %s13 = smul.u32 0, 8
  %v14 = vlaneseq
  %v15 = vshrl.u32 %v14, 7
  %v16 = vstv %s13
  %v17 = vadd.s32 %v16, %v15
  %vm18 = vcmp.lt.s32.totalorder %v17, 8
  %vm19 = vcmp.ge.s32.totalorder %v12, 0
  %vm20 = vmand %vm18, %vm19
  %vm21 = vcmp.lt.s32.totalorder %v12, 32
  %vm22 = vmand %vm20, %vm21
  %vm23 = vcmask 261120
  %v24 = vsel %vm23, %v11, -inf
  %25 = vmax.xlane.f32.xlu0 %v24
  %v26 = vpop.xlane.xlu0 %25
  %v27 = vsub.f32 %v11, %v26
  %v28 = vmul.f32 %v27, 1.442695
  %v29 = vpow.pop %v28
  %v30 = vsel %vm23, %v29, 0.0
  %31 = vadd.xlane.f32.xlu0 %v30
  %v32 = vpop.xlane.xlu0 %31
  %v33 = vlog2.pop %v32
  %v34 = vmul.f32 %v33, 0.6931472
  %v35 = vadd.f32 %v26, %v34
  %v36 = vlaneseq
  %v37 = vand.u32 %v36, 127
  %38 = vset.pattern.permute.xlu0 0
  %39 = vperm.xlu0 %38, %v12
  %v40 = vpop.permute.xlu0 %39
  %vm41 = vcmp.eq.s32.totalorder %v37, %v40
  %v42 = vsel %vm41, %v11, 0.0
  %v43 = vsel %vm23, %v42, 0.0
  %44 = vadd.xlane.f32.xlu0 %v43
  %v45 = vpop.xlane.xlu0 %44
  %v46 = vsub.f32 %v35, %v45
  %v47 = vsel %vm22, %v46, 0.0
  %vm48 = vcmask 7168
  %49 = vst.msk [vmem:[%s2] sm:$0xff] %vm48, %v47
  // Predicated region
  $region10: #{tpu_custom_call.1} parent=0 // pred_check
    _
  $region11: #{tpu_custom_call.1} parent=0 // pred_check_branch
    %51 = sbr.rel (0) target = $region13
  $region12: #{tpu_custom_call.1} parent=0 // pred_region
    _
  $region13: #{tpu_custom_call.1} parent=0 // pred_fallthru
    _
  // Predicated region
  $region14: #{tpu_custom_call.1} parent=0 // pred_check
    _
  $region15: #{tpu_custom_call.1} parent=0 // pred_check_branch
    %53 = sbr.rel (0) target = $region17
  $region16: #{tpu_custom_call.1} parent=0 // pred_region
    _
  $region17: #{tpu_custom_call.1} parent=0 // pred_fallthru
    _

</llo_original>
